<compile_context>
chip_gen: v6e
topology: v6e:2x2x1
jax: 0.10.0
libtpu: 0.0.40
codegen_flags: <defaults>
</compile_context>

<pallas_src>
import functools

import jax
import jax.numpy as jnp
from jax.experimental import pallas as pl
from jax.experimental.pallas import tpu as pltpu


def _ce_label_smooth_kernel(logits_ref, targets_ref, partial_ref, *,
                            epsilon, num_classes, batch):
    """One batch tile: per-row label-smoothed CE summed into a single partial.

    logits_ref : (TILE_N, C) in VMEM (any float dtype; widened per consumer)
    targets_ref: (TILE_N, 1) int32 in VMEM
    partial_ref: (8, 128) f32 output block; the tile's partial sum is stored at
                 [0, 0], zeros elsewhere, so jnp.sum over all tiles' blocks
                 recovers the total.
    """
    i = pl.program_id(0)
    x = logits_ref[...]                                   # (tn, C), native dtype
    tn, c = x.shape

    # Row max in the native dtype (exact for max); only the (tn, 1) column is widened.
    m = jnp.max(x, axis=1, keepdims=True).astype(jnp.float32)            # (tn, 1)

    # logsumexp: the f32 widen and the subtract fuse into the exp operand; no
    # full-tile f32 `shifted` temporary is materialized.
    sum_exp = jnp.sum(jnp.exp(x.astype(jnp.float32) - m),
                      axis=1, keepdims=True)                             # (tn, 1)
    lse = m + jnp.log(sum_exp)                                           # (tn, 1)

    # Folded label smoothing — single weighted class-axis pass:
    #   loss_i = logsumexp(x_i) - sum_j w_ij * x_ij,
    #   w_ij   = eps/C + (1 - eps) * [j == t_i]      (sum_j w_ij == 1)
    class_ids = jax.lax.broadcasted_iota(jnp.int32, (tn, c), 1)
    w = jnp.where(class_ids == targets_ref[...],
                  1.0 - epsilon + epsilon / num_classes,
                  epsilon / num_classes)                                 # (tn, C) f32
    wsum = jnp.sum(w * x.astype(jnp.float32), axis=1, keepdims=True)     # (tn, 1)

    loss_rows = lse - wsum                                               # (tn, 1)

    # Mask padded tail rows of a (possibly ragged) last tile.  Padded rows hold
    # undefined data, so every cross-row op must stay *after* this mask; all the
    # reductions above are per-row (axis=1) only.
    row_ids = i * tn + jax.lax.broadcasted_iota(jnp.int32, (tn, 1), 0)
    partial = jnp.sum(jnp.where(row_ids < batch, loss_rows, 0.0))

    # Lane-dense (8, 128) output block: partial at [0, 0], zeros elsewhere.
    r = jax.lax.broadcasted_iota(jnp.int32, partial_ref.shape, 0)
    l = jax.lax.broadcasted_iota(jnp.int32, partial_ref.shape, 1)
    partial_ref[...] = jnp.where((r == 0) & (l == 0), partial, 0.0)


def _vmem_limit_bytes():
    try:
        cap = int(pltpu.get_tpu_info().vmem_capacity_bytes)
    except Exception:
        cap = 64 * 1024 * 1024  # conservative fallback (v7x physical VMEM per TC)
    # ~75% of physical, capped: 48 MiB scoped on v7x, 96 MiB on v5e/v6e (raises the
    # small default scoped limits while leaving headroom under physical capacity).
    return int(min(cap * 3 // 4, 96 * 1024 * 1024))


def _pick_tile_n(n, c, itemsize, vmem_limit):
    """Rows per tile: VMEM-safe, byte-fat DMA steps, and a multi-tile grid floor."""
    # Per batch row of VMEM:
    #   - logits tile: c * itemsize, double-buffered by the pipeline      (x2)
    #   - targets strip: lane-padded to 128 lanes x 4 B, double-buffered  (x2)
    #   - one f32 working copy for the fused exp/weighted-sum operands    (x1)
    per_row = 2 * c * itemsize + 2 * 128 * 4 + c * 4
    budget = (vmem_limit * 4) // 5                 # ~20% headroom (outputs, spills)
    tile = max(8, budget // max(per_row, 1))

    # Keep DMA steps fat: aim for ~8 MiB of logits per pipeline buffer.
    rows_for_8mib = max(8, (8 * 1024 * 1024) // max(c * itemsize, 1))
    tile = min(tile, rows_for_8mib)

    # Never collapse to a 1-step grid for non-trivial batches: >= 4 tiles keeps both
    # v7x TensorCores busy and lets the double-buffer pipeline overlap DMA/compute.
    min_tiles = 4 if n >= 64 else 1
    tile = min(tile, max(8, -(-n // min_tiles)))

    if tile >= n:
        return n
    return max(8, (tile // 8) * 8)


def cross_entropy_label_smooth(logits, targets, *, num_classes, epsilon, tile_n=None):
    """logits: (N, C) float, targets: (N,) int — returns scalar f32 loss."""
    n, c = logits.shape
    assert c == num_classes
    targets_2d = targets.astype(jnp.int32).reshape(n, 1)

    vmem_limit = _vmem_limit_bytes()
    itemsize = jnp.dtype(logits.dtype).itemsize
    if tile_n is None:
        tile_n = _pick_tile_n(n, c, itemsize, vmem_limit)
    assert tile_n == n or tile_n % 8 == 0, "tile_n must be a multiple of 8 or the full batch"
    num_tiles = pl.cdiv(n, tile_n)

    kernel = functools.partial(
        _ce_label_smooth_kernel,
        epsilon=float(epsilon),
        num_classes=int(num_classes),
        batch=int(n),
    )

    cost = pl.CostEstimate(
        flops=9 * n * c,          # max/sub/add/cmp/select/mul/add-reduce per element
        transcendentals=n * c,    # exp
        bytes_accessed=n * c * itemsize + 4 * n + 4 * num_tiles * 8 * 128,
    )

    partials = pl.pallas_call(
        kernel,
        grid=(num_tiles,),
        out_shape=jax.ShapeDtypeStruct((num_tiles * 8, 128), jnp.float32),
        in_specs=[
            pl.BlockSpec((tile_n, c), lambda i: (i, 0)),   # logits tile
            pl.BlockSpec((tile_n, 1), lambda i: (i, 0)),   # targets strip
        ],
        out_specs=pl.BlockSpec((8, 128), lambda i: (i, 0)),
        compiler_params=pltpu.CompilerParams(
            # No cross-tile carry: each tile writes its own partial block, so the
            # batch axis can shard across both TensorCores on v7x.
            dimension_semantics=("parallel",),
            vmem_limit_bytes=vmem_limit,
        ),
        cost_estimate=cost,
    )(logits, targets_2d)

    # Tiny final reduction of per-tile partials; divide by the true batch size.
    return jnp.sum(partials) / jnp.float32(n)


def _reference(logits, targets, num_classes, epsilon):
    log_probs = jax.nn.log_softmax(logits.astype(jnp.float32), axis=1)
    one_hot = jax.nn.one_hot(targets, num_classes, dtype=jnp.float32)
    smoothed = (1.0 - epsilon) * one_hot + epsilon / num_classes
    return (-smoothed * log_probs).mean(0).sum()


if __name__ == "__main__":
    key = jax.random.PRNGKey(0)
    k1, k2, k3, k4, k5, k6 = jax.random.split(key, 6)
    epsilon = 0.1

    # Test 1: small shapes, single tile (auto tile selection).
    num_classes, batch = 16, 8
    logits = jax.random.normal(k1, (batch, num_classes), dtype=jnp.float32)
    targets = jax.random.randint(k2, (batch,), 0, num_classes, dtype=jnp.int32)
    loss = cross_entropy_label_smooth(
        logits, targets, num_classes=num_classes, epsilon=epsilon
    )
    jax.block_until_ready(loss)
    ref = _reference(logits, targets, num_classes, epsilon)
    assert jnp.allclose(loss, ref, atol=1e-4, rtol=1e-5), (loss, ref)

    # Test 2: multi-tile grid with a ragged tail (exercises masking + partial sums).
    num_classes2, batch2 = 128, 24
    logits2 = jax.random.normal(k3, (batch2, num_classes2), dtype=jnp.float32)
    targets2 = jax.random.randint(k4, (batch2,), 0, num_classes2, dtype=jnp.int32)
    loss2 = cross_entropy_label_smooth(
        logits2, targets2, num_classes=num_classes2, epsilon=epsilon, tile_n=16
    )
    jax.block_until_ready(loss2)
    ref2 = _reference(logits2, targets2, num_classes2, epsilon)
    assert jnp.allclose(loss2, ref2, atol=1e-4, rtol=1e-5), (loss2, ref2)

    # Test 3: bf16 logits with auto tiling (exercises >=4-tile grid floor + per-consumer widen).
    num_classes3, batch3 = 512, 96
    logits3 = jax.random.normal(k5, (batch3, num_classes3), dtype=jnp.float32).astype(jnp.bfloat16)
    targets3 = jax.random.randint(k6, (batch3,), 0, num_classes3, dtype=jnp.int32)
    loss3 = cross_entropy_label_smooth(
        logits3, targets3, num_classes=num_classes3, epsilon=epsilon
    )
    jax.block_until_ready(loss3)
    ref3 = _reference(logits3, targets3, num_classes3, epsilon)
    assert jnp.allclose(loss3, ref3, atol=2e-3, rtol=1e-3), (loss3, ref3)

    print("KERNEL_OK")
</pallas_src>

<mosaic_0001>
module attributes {stable_mosaic.version = 11 : i64} {
  func.func @_ce_label_smooth_kernel(%arg0: i32, %arg1: memref<8x16xf32, #tpu.memory_space<vmem>>, %arg2: memref<8x1xi32, #tpu.memory_space<vmem>>, %arg3: memref<8x128xf32, #tpu.memory_space<vmem>>) attributes {dimension_semantics = [#tpu.dimension_semantics<parallel>], iteration_bounds = array<i64: 1>, scalar_prefetch = 0 : i64, scratch_operands = 0 : i64, tpu.core_type = #tpu.core_type<tc>, window_params = [{transform_indices = @transform_0, window_bounds = array<i64: 8, 16>}, {transform_indices = @transform_1, window_bounds = array<i64: 8, 1>}, {transform_indices = @transform_2, window_bounds = array<i64: 8, 128>}]} {
    %c0 = arith.constant 0 : index
    %c0_0 = arith.constant 0 : index
    %0 = vector.load %arg1[%c0, %c0_0] : memref<8x16xf32, #tpu.memory_space<vmem>>, vector<8x16xf32>
    %cst = arith.constant dense<0xFF800000> : vector<8xf32>
    %1 = vector.multi_reduction <maximumf>, %0, %cst [1] : vector<8x16xf32> to vector<8xf32>
    %2 = vector.shape_cast %1 : vector<8xf32> to vector<8x1xf32>
    %3 = vector.broadcast %2 : vector<8x1xf32> to vector<8x16xf32>
    %4 = arith.subf %0, %3 : vector<8x16xf32>
    %5 = math.exp %4 : vector<8x16xf32>
    %cst_1 = arith.constant dense<0.000000e+00> : vector<8xf32>
    %6 = vector.multi_reduction <add>, %5, %cst_1 [1] : vector<8x16xf32> to vector<8xf32>
    %7 = vector.shape_cast %6 : vector<8xf32> to vector<8x1xf32>
    %8 = math.log %7 : vector<8x1xf32>
    %9 = arith.addf %2, %8 : vector<8x1xf32>
    %10 = tpu.iota {dimensions = array<i32: 1>} : vector<8x16xi32>
    %c0_2 = arith.constant 0 : index
    %c0_3 = arith.constant 0 : index
    %11 = vector.load %arg2[%c0_2, %c0_3] : memref<8x1xi32, #tpu.memory_space<vmem>>, vector<8x1xi32>
    %12 = vector.broadcast %11 : vector<8x1xi32> to vector<8x16xi32>
    %13 = arith.cmpi eq, %10, %12 : vector<8x16xi32>
    %cst_4 = arith.constant 9.062500e-01 : f32
    %cst_5 = arith.constant 6.250000e-03 : f32
    %14 = vector.broadcast %cst_4 : f32 to vector<8x16xf32>
    %15 = vector.broadcast %cst_5 : f32 to vector<8x16xf32>
    %16 = arith.select %13, %14, %15 : vector<8x16xi1>, vector<8x16xf32>
    %17 = arith.mulf %16, %0 : vector<8x16xf32>
    %cst_6 = arith.constant dense<0.000000e+00> : vector<8xf32>
    %18 = vector.multi_reduction <add>, %17, %cst_6 [1] : vector<8x16xf32> to vector<8xf32>
    %19 = vector.shape_cast %18 : vector<8xf32> to vector<8x1xf32>
    %20 = arith.subf %9, %19 : vector<8x1xf32>
    %c8_i32 = arith.constant 8 : i32
    %21 = arith.muli %arg0, %c8_i32 : i32
    %22 = tpu.iota {dimensions = array<i32: 0>} : vector<8x1xi32>
    %23 = vector.broadcast %21 : i32 to vector<8x1xi32>
    %24 = arith.addi %23, %22 : vector<8x1xi32>
    %c8_i32_7 = arith.constant 8 : i32
    %25 = vector.broadcast %c8_i32_7 : i32 to vector<8x1xi32>
    %26 = arith.cmpi slt, %24, %25 : vector<8x1xi32>
    %cst_8 = arith.constant 0.000000e+00 : f32
    %27 = vector.broadcast %cst_8 : f32 to vector<8x1xf32>
    %28 = arith.select %26, %20, %27 : vector<8x1xi1>, vector<8x1xf32>
    %29 = vector.shape_cast %28 : vector<8x1xf32> to vector<1x8x1xf32>
    %cst_9 = arith.constant dense<0.000000e+00> : vector<1xf32>
    %30 = vector.multi_reduction <add>, %29, %cst_9 [1, 2] : vector<1x8x1xf32> to vector<1xf32>
    %31 = vector.shape_cast %30 : vector<1xf32> to vector<1x1x1xf32>
    %32 = vector.extract %31[0, 0, 0] : f32 from vector<1x1x1xf32>
    %33 = tpu.iota {dimensions = array<i32: 0>} : vector<8x128xi32>
    %34 = tpu.iota {dimensions = array<i32: 1>} : vector<8x128xi32>
    %c0_i32 = arith.constant 0 : i32
    %35 = vector.broadcast %c0_i32 : i32 to vector<8x128xi32>
    %36 = arith.cmpi eq, %33, %35 : vector<8x128xi32>
    %c0_i32_10 = arith.constant 0 : i32
    %37 = vector.broadcast %c0_i32_10 : i32 to vector<8x128xi32>
    %38 = arith.cmpi eq, %34, %37 : vector<8x128xi32>
    %39 = arith.andi %36, %38 : vector<8x128xi1>
    %cst_11 = arith.constant 0.000000e+00 : f32
    %40 = vector.broadcast %32 : f32 to vector<8x128xf32>
    %41 = vector.broadcast %cst_11 : f32 to vector<8x128xf32>
    %42 = arith.select %39, %40, %41 : vector<8x128xi1>, vector<8x128xf32>
    %c0_12 = arith.constant 0 : index
    %c0_13 = arith.constant 0 : index
    %43 = vector.load %arg3[%c0_12, %c0_13] : memref<8x128xf32, #tpu.memory_space<vmem>>, vector<8x128xf32>
    tpu.vector_store %arg3[%c0_12, %c0_13], %42 {strides = array<i32>} : memref<8x128xf32, #tpu.memory_space<vmem>>, vector<8x128xf32>,
    return
  }
  func.func @transform_0(%arg0: i32) -> (i32, i32) {
    %c0_i32 = arith.constant 0 : i32
    %c0_i32_0 = arith.constant 0 : i32
    return %arg0, %c0_i32 : i32, i32
  }
  func.func @transform_1(%arg0: i32) -> (i32, i32) {
    %c0_i32 = arith.constant 0 : i32
    %c0_i32_0 = arith.constant 0 : i32
    return %arg0, %c0_i32 : i32, i32
  }
  func.func @transform_2(%arg0: i32) -> (i32, i32) {
    %c0_i32 = arith.constant 0 : i32
    %c0_i32_0 = arith.constant 0 : i32
    return %arg0, %c0_i32 : i32, i32
  }
}

</mosaic_0001>

<llo_original>
// kernel: tpu_custom_call.1
$region0: #{tpu_custom_call.1}
  #allocation0 [shape = 'u32[]', space=smem, size = 0x4, offset = 0x4, fixed_abs, tag = 'smem constant byte address 0x4 - core index']
  #allocation1 [shape = 'u32[144,128]{1,0:T(1,128)}', space=vmem, size = 0x12000, scoped, tag = 'internal scratch']
  %s0 = inlined_call_operand.vmem [shape: f32[8,16], index: 0, kind: input, shape index: {}]
  %s1 = inlined_call_operand.vmem [shape: s32[8,1], index: 1, kind: input, shape index: {}]
  %s2 = inlined_call_operand.hbm [shape: f32[8,128], index: 2, kind: output, shape index: {}]
  %s3 = sld [smem:[#allocation0]]
  $region18: #{tpu_custom_call.1} parent=0
    _
  %s5 = ssub.s32 1, %s3
  %s6 = scalar_select 0, %s5, %s3
  $region1: #{tpu_custom_call.1} parent=0
    #allocation2 [shape = 'u8[4096]{0}', space=vmem, size = 0x1000, scoped, tag = 'output window, operand 0, single buffered']
    #allocation3 [shape = 's32[1]{0}', space=sflag, size = 0x4, scoped, tag = 'scoped memory for tpu_custom_call.1']
    %7 = vsyncpa [#allocation3], 0
    // Predicated region
    $region2: #{tpu_custom_call.1} parent=1 // pred_check
      _
    $region3: #{tpu_custom_call.1} parent=1 // pred_check_branch
      %9 = sbr.rel (0) target = $region5
    $region4: #{tpu_custom_call.1} parent=1 // pred_region
      _
    $region5: #{tpu_custom_call.1} parent=1 // pred_fallthru
      _
    // Predicated region
    $region6: #{tpu_custom_call.1} parent=1 // pred_check
      _
    $region7: #{tpu_custom_call.1} parent=1 // pred_check_branch
      %11 = sbr.rel (0) target = $region9
    $region8: #{tpu_custom_call.1} parent=1 // pred_region
      _
    $region9: #{tpu_custom_call.1} parent=1 // pred_fallthru
      _
    %v12 = vld [vmem:[%s0] sm:$0xff]
    %vm13 = vcmask 130048
    %v14 = vsel %vm13, %v12, -inf
    %15 = vmax.xlane.f32.xlu0 %v14
    %v16 = vpop.xlane.xlu0 %15
    %v17 = vsub.f32 %v12, %v16
    %v18 = vmul.f32 %v17, 1.442695
    %v19 = vpow.pop %v18
    %v20 = vsel %vm13, %v19, 0.0
    %21 = vadd.xlane.f32.xlu0 %v20
    %v22 = vpop.xlane.xlu0 %21
    %v23 = vlog2.pop %v22
    %v24 = vmul.f32 %v23, 0.6931472
    %v25 = vadd.f32 %v16, %v24
    %v26 = vlaneseq
    %v27 = vand.u32 %v26, 127
    %v28 = vld [vmem:[%s1] sm:$0xff]
    %29 = vset.pattern.permute.xlu0 0
    %30 = vperm.xlu0 %29, %v28
    %v31 = vpop.permute.xlu0 %30
    %vm32 = vcmp.eq.s32.totalorder %v27, %v31
    %v33 = vsel %vm32, 0.90625, 0.00625
    %v34 = vmul.f32 %v33, %v12
    %v35 = vsel %vm13, %v34, 0.0
    %36 = vadd.xlane.f32.xlu0 %v35
    %v37 = vpop.xlane.xlu0 %36
    %v38 = vsub.f32 %v25, %v37
    %s39 = smul.u32 0, 8
    %v40 = vlaneseq
    %v41 = vshrl.u32 %v40, 7
    %v42 = vstv %s39
    %v43 = vadd.s32 %v42, %v41
    %vm44 = vcmp.lt.s32.totalorder %v43, 8
    %v45 = vsel %vm44, %v38, 0.0
    %vm46 = vcmask 7168
    %v47 = vsel %vm46, %v45, 0.0
    %48 = vadd.xlane.f32.xlu0 %v47
    %v49 = vpop.xlane.xlu0 %48
    %v50 = vrot.slane %v49, 4
    %v51 = vadd.f32 %v49, %v50
    %v52 = vrot.slane %v51, 2
    %v53 = vadd.f32 %v51, %v52
    %v54 = vrot.slane %v53, 1
    %v55 = vadd.f32 %v53, %v54
    %s56 = vtos %v55
    %vm57 = vcmp.eq.s32.totalorder %v41, 0
    %vm58 = vcmp.eq.s32.totalorder %v27, 0
    %vm59 = vmand %vm57, %vm58
    %v60 = vstv %s56
    %v61 = vsel %vm59, %v60, 0.0
    %62 = vst [vmem:[#allocation2] sm:$0xff] %v61
    // Predicated region
    $region10: #{tpu_custom_call.1} parent=1 // pred_check
      _
    $region11: #{tpu_custom_call.1} parent=1 // pred_check_branch
      %64 = sbr.rel (0) target = $region13
    $region12: #{tpu_custom_call.1} parent=1 // pred_region
      %s66 = ssub.s32 128, 128
      %67 = vsyncadd [#allocation3], %s66
      %s69 = sshll.u32 [#allocation2], 4
      %s70 = int_to_ptr.vmem [resolvable:$true] %s69
      %72 = dma.vmem_to_hbm [thread:$0]  %s70, 128, %s2, [#allocation3]
    $region13: #{tpu_custom_call.1} parent=1 // pred_fallthru
      _
    // Predicated region
    $region14: #{tpu_custom_call.1} parent=1 // pred_check
      _
    $region15: #{tpu_custom_call.1} parent=1 // pred_check_branch
      %74 = sbr.rel (0) target = $region17
    $region16: #{tpu_custom_call.1} parent=1 // pred_region
      %75 = dma.done [#allocation3], 128
    $region17: #{tpu_custom_call.1} parent=1 // pred_fallthru
      _
    %76 = vsyncpa [#allocation3], 1

</llo_original>
